<compile_context>
chip_gen: v5e
topology: v5e:2x2
jax: 0.10.0
libtpu: 0.0.40
codegen_flags: <defaults>
</compile_context>

<pallas_src>
import functools
import math

import jax
import jax.numpy as jnp
import numpy as np
from jax.experimental import pallas as pl
from jax.experimental.pallas import tpu as pltpu


# ---------------------------------------------------------------------------
# Deterministic filter construction (mirrors LowPassFilter1d.__init__).
# ---------------------------------------------------------------------------
def make_lowpass_filter(cutoff=0.5, half_width=0.6, kernel_size=12):
    half_size = kernel_size // 2
    even = kernel_size % 2 == 0
    delta_f = 4 * half_width
    A = 2.285 * (half_size - 1) * math.pi * delta_f + 7.95
    if A > 50.0:
        beta = 0.1102 * (A - 8.7)
    elif A >= 21.0:
        beta = 0.5842 * (A - 21) ** 0.4 + 0.07886 * (A - 21.0)
    else:
        beta = 0.0

    # torch.kaiser_window(kernel_size, beta=beta, periodic=False)
    n = jnp.arange(kernel_size, dtype=jnp.float32)
    ratio = 2.0 * n / (kernel_size - 1) - 1.0
    window = jax.scipy.special.i0(
        beta * jnp.sqrt(jnp.maximum(1.0 - ratio * ratio, 0.0))
    ) / jax.scipy.special.i0(jnp.float32(beta))

    if even:
        time = jnp.arange(-half_size, half_size, dtype=jnp.float32) + 0.5
    else:
        time = jnp.arange(kernel_size, dtype=jnp.float32) - half_size

    if cutoff == 0:
        filt = jnp.zeros_like(time)
    else:
        filt = 2.0 * cutoff * window * jnp.sinc(2.0 * cutoff * time)
        filt = filt / jnp.sum(filt)
    return filt.astype(jnp.float32)


# ---------------------------------------------------------------------------
# Pallas kernel: zero-padded cross-correlation along the lane axis.
#
# The block holds `groups` independent sub-rows of length `seg_len` packed along
# the lane axis (cols = groups * seg_len).  For each tap k (static Python float),
# the shifted window is a static slice of the in-register padded value; taps
# whose shift would cross a sub-row boundary are masked to zero, which is
# exactly equivalent to zero-padding every sub-row by half_size on each side.
# ---------------------------------------------------------------------------
def _lowpass_kernel(x_ref, o_ref, *, taps, half_size, seg_len, groups, pad):
    xv = x_ref[...].astype(jnp.float32)          # single load, single upcast
    rows, _ = xv.shape
    out_cols = o_ref.shape[-1]

    if pad:
        z = jnp.zeros((rows, half_size), dtype=jnp.float32)
        xp = jnp.concatenate([z, xv, z], axis=-1)   # in-register halo (no HBM pad pass)
    else:
        xp = xv

    if pad and groups > 1:
        # Position of each lane within its packed sub-row (hoisted out of the tap loop).
        tpos = jax.lax.broadcasted_iota(jnp.int32, (rows, out_cols), 1) % seg_len

    acc = jnp.zeros((rows, out_cols), dtype=jnp.float32)
    for k, tap in enumerate(taps):               # static unroll; taps are constants
        win = xp[:, k:k + out_cols]              # static slice of the loaded value
        if pad and groups > 1:
            d = k - half_size
            if d < 0:
                win = jnp.where(tpos >= -d, win, 0.0)
            elif d > 0:
                win = jnp.where(tpos < seg_len - d, win, 0.0)
        acc = acc + tap * win
    o_ref[...] = acc.astype(o_ref.dtype)


# ---------------------------------------------------------------------------
# Wrapper helpers.
# ---------------------------------------------------------------------------
def _round_up(x, m):
    return (x + m - 1) // m * m


def _sublane_multiple(itemsize):
    # Keep block rows a multiple of the dtype's sublane packing (f32:8, bf16:16, i8:32).
    return {4: 8, 2: 16, 1: 32}.get(itemsize, 8)


def _pick_groups(n_rows, seg_len):
    """Pack G consecutive rows onto the lane axis (free reshape) so stores are
    lane-dense even when seg_len << 128.  Prefer G with (G*seg_len) % 128 == 0
    (unmasked vst) while keeping >= 8 packed rows (full sublanes)."""
    if seg_len >= 128:
        return 1
    cap = max(1, min(512 // seg_len, n_rows))
    divisors = [g for g in range(1, cap + 1) if n_rows % g == 0]
    lane_full = [g for g in divisors if (g * seg_len) % 128 == 0]
    good = [g for g in lane_full if n_rows // g >= 8]
    if good:
        return max(good)
    if lane_full:
        return max(lane_full)
    near = [g for g in divisors if g * seg_len <= 128]
    return max(near) if near else 1


def _pick_block_rows(n_rows, n_cols, itemsize, vmem_budget_bytes=16 << 20):
    # Budget: double-buffered input + output blocks plus ~6 f32 temporaries per element.
    # Kept <= ~16 MiB so it fits inside the explicit 32 MiB scoped limit set below and
    # comfortably inside v7x's 64 MiB physical VMEM (v5e default scoped limit is 16 MiB).
    per_row = max(1, n_cols * (4 * itemsize + 6 * 4))
    rows = vmem_budget_bytes // per_row
    sub = _sublane_multiple(itemsize)
    rows = max(sub, min(1024, rows))
    rows = (rows // sub) * sub
    return min(rows, _round_up(n_rows, sub))


# ---------------------------------------------------------------------------
# Public wrapper: LowPassFilter1d.forward (stride=1).
# ---------------------------------------------------------------------------
def lowpass_filter_1d(x, taps, *, kernel_size=12, stride=1, pad=True):
    if stride != 1:
        # TODO(synk): strided conv (stride > 1) not implemented in the kernel.
        raise NotImplementedError("stride > 1 not supported")
    taps = tuple(float(t) for t in taps)
    assert len(taps) == kernel_size

    orig_shape = x.shape
    L = int(orig_shape[-1])
    half_size = kernel_size // 2
    even = kernel_size % 2 == 0

    R = 1
    for d in orig_shape[:-1]:
        R *= int(d)
    x2 = x.reshape(R, L)

    if pad:
        out_len = L  # (L + 2*half_size - K + 1) minus the even-kernel trim == L
        groups = _pick_groups(R, L)
    else:
        out_len = L - kernel_size + 1 - (1 if even else 0)
        groups = 1  # packing only valid when per-row output length == L

    Rg = R // groups
    Cin = groups * L
    Cout = groups * out_len
    xg = x2.reshape(Rg, Cin)          # free reshape: rows packed along lanes

    # TODO(synk): for very large L (Cin*block_rows exceeding the VMEM budget at the
    # minimum row tile), a second grid axis over the lane dim with a (kernel_size-1)
    # halo would be needed.
    block_rows = _pick_block_rows(Rg, Cin, x.dtype.itemsize)
    nblocks = pl.cdiv(Rg, block_rows)  # partial last block handled by Pallas masking

    kernel = functools.partial(
        _lowpass_kernel,
        taps=taps,
        half_size=half_size,
        seg_len=L,
        groups=groups,
        pad=pad,
    )

    out = pl.pallas_call(
        kernel,
        out_shape=jax.ShapeDtypeStruct((Rg, Cout), x.dtype),
        grid_spec=pltpu.PrefetchScalarGridSpec(
            num_scalar_prefetch=0,
            grid=(nblocks,),
            in_specs=[pl.BlockSpec((block_rows, Cin), lambda i: (i, 0))],
            out_specs=pl.BlockSpec((block_rows, Cout), lambda i: (i, 0)),
        ),
        compiler_params=pltpu.CompilerParams(
            # Rows are fully independent -> "parallel" lets v7x shard the grid across
            # both TensorCores (neutral on single-TC v5e/v6e).
            dimension_semantics=("parallel",),
            # Explicit scoped-VMEM limit (v5e default is 16 MiB); safe on v7x's 64 MiB.
            vmem_limit_bytes=32 * 1024 * 1024,
        ),
    )(xg)

    return out.reshape(R, out_len).reshape(tuple(orig_shape[:-1]) + (-1,))


# ---------------------------------------------------------------------------
# Pure-JAX reference (for validation only).
# ---------------------------------------------------------------------------
def lowpass_reference(x, filt, *, kernel_size=12, pad=True):
    half_size = kernel_size // 2
    L = x.shape[-1]
    x3 = x.reshape(-1, 1, L).astype(jnp.float32)
    out = jax.lax.conv_general_dilated(
        x3,
        filt.reshape(1, 1, kernel_size).astype(jnp.float32),
        window_strides=(1,),
        padding=[(half_size, half_size)] if pad else [(0, 0)],
        dimension_numbers=("NCH", "OIH", "NCH"),
    )
    if kernel_size % 2 == 0:
        out = out[..., :-1]
    return out.reshape(tuple(x.shape[:-1]) + (-1,)).astype(x.dtype)


if __name__ == "__main__":
    key = jax.random.PRNGKey(0)
    x = jax.random.normal(key, (2, 4, 16, 16), dtype=jnp.float32)

    filt = make_lowpass_filter(cutoff=0.5, half_width=0.6, kernel_size=12)
    taps = tuple(float(v) for v in np.asarray(filt))   # bake taps as Python constants

    fwd = jax.jit(
        functools.partial(lowpass_filter_1d, taps=taps, kernel_size=12, stride=1, pad=True)
    )
    out = jax.block_until_ready(fwd(x))

    ref = lowpass_reference(x, filt, kernel_size=12, pad=True)

    assert out.shape == x.shape, (out.shape, x.shape)
    assert jnp.allclose(out, ref, atol=1e-5, rtol=1e-5), float(jnp.max(jnp.abs(out - ref)))
    print("KERNEL_OK")
</pallas_src>

<mosaic_0001>
module attributes {stable_mosaic.version = 11 : i64} {
  func.func @_lowpass_kernel(%arg0: i32, %arg1: memref<8x256xf32, #tpu.memory_space<vmem>>, %arg2: memref<8x256xf32, #tpu.memory_space<vmem>>) attributes {dimension_semantics = [#tpu.dimension_semantics<parallel>], iteration_bounds = array<i64: 1>, scalar_prefetch = 0 : i64, scratch_operands = 0 : i64, tpu.core_type = #tpu.core_type<tc>, window_params = [{transform_indices = @transform_0, window_bounds = array<i64: 8, 256>}, {transform_indices = @transform_1, window_bounds = array<i64: 8, 256>}]} {
    %c0 = arith.constant 0 : index
    %c0_0 = arith.constant 0 : index
    %0 = vector.load %arg1[%c0, %c0_0] : memref<8x256xf32, #tpu.memory_space<vmem>>, vector<8x256xf32>
    %cst = arith.constant 0.000000e+00 : f32
    %1 = vector.broadcast %cst : f32 to vector<8x6xf32>
    %2 = tpu.concatenate %1, %0, %1 in 1 : vector<8x6xf32>, vector<8x256xf32>, vector<8x6xf32> -> vector<8x268xf32>
    %3 = tpu.iota {dimensions = array<i32: 1>} : vector<8x256xi32>
    %c16_i32 = arith.constant 16 : i32
    %c0_i32 = arith.constant 0 : i32
    %4 = arith.cmpi eq, %c16_i32, %c0_i32 : i32
    %c1_i32 = arith.constant 1 : i32
    %5 = arith.select %4, %c1_i32, %c16_i32 : i32
    %6 = vector.broadcast %5 : i32 to vector<8x256xi32>
    %7 = arith.remsi %3, %6 : vector<8x256xi32>
    %c0_i32_1 = arith.constant 0 : i32
    %8 = vector.broadcast %c0_i32_1 : i32 to vector<8x256xi32>
    %9 = arith.cmpi ne, %7, %8 : vector<8x256xi32>
    %c0_i32_2 = arith.constant 0 : i32
    %10 = vector.broadcast %c0_i32_2 : i32 to vector<8x256xi32>
    %11 = arith.cmpi slt, %7, %10 : vector<8x256xi32>
    %c0_i32_3 = arith.constant 0 : i32
    %12 = arith.cmpi slt, %5, %c0_i32_3 : i32
    %13 = vector.broadcast %12 : i1 to vector<8x256xi1>
    %14 = vector.broadcast %13 : vector<8x256xi1> to vector<8x256xi1>
    %15 = arith.xori %11, %14 : vector<8x256xi1>
    %16 = arith.andi %15, %9 : vector<8x256xi1>
    %17 = vector.broadcast %5 : i32 to vector<8x256xi32>
    %18 = arith.addi %7, %17 : vector<8x256xi32>
    %19 = arith.select %16, %18, %7 : vector<8x256xi1>, vector<8x256xi32>
    %cst_4 = arith.constant 0.000000e+00 : f32
    %20 = vector.broadcast %cst_4 : f32 to vector<8x256xf32>
    %21 = vector.extract_strided_slice %2 {offsets = [0, 0], sizes = [8, 256], strides = [1, 1]} : vector<8x268xf32> to vector<8x256xf32>
    %c6_i32 = arith.constant 6 : i32
    %22 = vector.broadcast %c6_i32 : i32 to vector<8x256xi32>
    %23 = arith.cmpi sge, %19, %22 : vector<8x256xi32>
    %cst_5 = arith.constant 0.000000e+00 : f32
    %24 = vector.broadcast %cst_5 : f32 to vector<8x256xf32>
    %25 = arith.select %23, %21, %24 : vector<8x256xi1>, vector<8x256xf32>
    %cst_6 = arith.constant -3.59285477E-5 : f32
    %26 = vector.broadcast %cst_6 : f32 to vector<8x256xf32>
    %27 = arith.mulf %26, %25 : vector<8x256xf32>
    %28 = arith.addf %20, %27 : vector<8x256xf32>
    %29 = vector.extract_strided_slice %2 {offsets = [0, 1], sizes = [8, 256], strides = [1, 1]} : vector<8x268xf32> to vector<8x256xf32>
    %c5_i32 = arith.constant 5 : i32
    %30 = vector.broadcast %c5_i32 : i32 to vector<8x256xi32>
    %31 = arith.cmpi sge, %19, %30 : vector<8x256xi32>
    %cst_7 = arith.constant 0.000000e+00 : f32
    %32 = vector.broadcast %cst_7 : f32 to vector<8x256xf32>
    %33 = arith.select %31, %29, %32 : vector<8x256xi1>, vector<8x256xf32>
    %cst_8 = arith.constant 0.00172930246 : f32
    %34 = vector.broadcast %cst_8 : f32 to vector<8x256xf32>
    %35 = arith.mulf %34, %33 : vector<8x256xf32>
    %36 = arith.addf %28, %35 : vector<8x256xf32>
    %37 = vector.extract_strided_slice %2 {offsets = [0, 2], sizes = [8, 256], strides = [1, 1]} : vector<8x268xf32> to vector<8x256xf32>
    %c4_i32 = arith.constant 4 : i32
    %38 = vector.broadcast %c4_i32 : i32 to vector<8x256xi32>
    %39 = arith.cmpi sge, %19, %38 : vector<8x256xi32>
    %cst_9 = arith.constant 0.000000e+00 : f32
    %40 = vector.broadcast %cst_9 : f32 to vector<8x256xf32>
    %41 = arith.select %39, %37, %40 : vector<8x256xi1>, vector<8x256xf32>
    %cst_10 = arith.constant -0.0121011613 : f32
    %42 = vector.broadcast %cst_10 : f32 to vector<8x256xf32>
    %43 = arith.mulf %42, %41 : vector<8x256xf32>
    %44 = arith.addf %36, %43 : vector<8x256xf32>
    %45 = vector.extract_strided_slice %2 {offsets = [0, 3], sizes = [8, 256], strides = [1, 1]} : vector<8x268xf32> to vector<8x256xf32>
    %c3_i32 = arith.constant 3 : i32
    %46 = vector.broadcast %c3_i32 : i32 to vector<8x256xi32>
    %47 = arith.cmpi sge, %19, %46 : vector<8x256xi32>
    %cst_11 = arith.constant 0.000000e+00 : f32
    %48 = vector.broadcast %cst_11 : f32 to vector<8x256xf32>
    %49 = arith.select %47, %45, %48 : vector<8x256xi1>, vector<8x256xf32>
    %cst_12 = arith.constant 0.0483337194 : f32
    %50 = vector.broadcast %cst_12 : f32 to vector<8x256xf32>
    %51 = arith.mulf %50, %49 : vector<8x256xf32>
    %52 = arith.addf %44, %51 : vector<8x256xf32>
    %53 = vector.extract_strided_slice %2 {offsets = [0, 4], sizes = [8, 256], strides = [1, 1]} : vector<8x268xf32> to vector<8x256xf32>
    %c2_i32 = arith.constant 2 : i32
    %54 = vector.broadcast %c2_i32 : i32 to vector<8x256xi32>
    %55 = arith.cmpi sge, %19, %54 : vector<8x256xi32>
    %cst_13 = arith.constant 0.000000e+00 : f32
    %56 = vector.broadcast %cst_13 : f32 to vector<8x256xf32>
    %57 = arith.select %55, %53, %56 : vector<8x256xi1>, vector<8x256xf32>
    %cst_14 = arith.constant -0.151523814 : f32
    %58 = vector.broadcast %cst_14 : f32 to vector<8x256xf32>
    %59 = arith.mulf %58, %57 : vector<8x256xf32>
    %60 = arith.addf %52, %59 : vector<8x256xf32>
    %61 = vector.extract_strided_slice %2 {offsets = [0, 5], sizes = [8, 256], strides = [1, 1]} : vector<8x268xf32> to vector<8x256xf32>
    %c1_i32_15 = arith.constant 1 : i32
    %62 = vector.broadcast %c1_i32_15 : i32 to vector<8x256xi32>
    %63 = arith.cmpi sge, %19, %62 : vector<8x256xi32>
    %cst_16 = arith.constant 0.000000e+00 : f32
    %64 = vector.broadcast %cst_16 : f32 to vector<8x256xf32>
    %65 = arith.select %63, %61, %64 : vector<8x256xi1>, vector<8x256xf32>
    %cst_17 = arith.constant 0.613597929 : f32
    %66 = vector.broadcast %cst_17 : f32 to vector<8x256xf32>
    %67 = arith.mulf %66, %65 : vector<8x256xf32>
    %68 = arith.addf %60, %67 : vector<8x256xf32>
    %69 = vector.extract_strided_slice %2 {offsets = [0, 6], sizes = [8, 256], strides = [1, 1]} : vector<8x268xf32> to vector<8x256xf32>
    %cst_18 = arith.constant 0.613597929 : f32
    %70 = vector.broadcast %cst_18 : f32 to vector<8x256xf32>
    %71 = arith.mulf %70, %69 : vector<8x256xf32>
    %72 = arith.addf %68, %71 : vector<8x256xf32>
    %73 = vector.extract_strided_slice %2 {offsets = [0, 7], sizes = [8, 256], strides = [1, 1]} : vector<8x268xf32> to vector<8x256xf32>
    %c15_i32 = arith.constant 15 : i32
    %74 = vector.broadcast %c15_i32 : i32 to vector<8x256xi32>
    %75 = arith.cmpi slt, %19, %74 : vector<8x256xi32>
    %cst_19 = arith.constant 0.000000e+00 : f32
    %76 = vector.broadcast %cst_19 : f32 to vector<8x256xf32>
    %77 = arith.select %75, %73, %76 : vector<8x256xi1>, vector<8x256xf32>
    %cst_20 = arith.constant -0.151523814 : f32
    %78 = vector.broadcast %cst_20 : f32 to vector<8x256xf32>
    %79 = arith.mulf %78, %77 : vector<8x256xf32>
    %80 = arith.addf %72, %79 : vector<8x256xf32>
    %81 = vector.extract_strided_slice %2 {offsets = [0, 8], sizes = [8, 256], strides = [1, 1]} : vector<8x268xf32> to vector<8x256xf32>
    %c14_i32 = arith.constant 14 : i32
    %82 = vector.broadcast %c14_i32 : i32 to vector<8x256xi32>
    %83 = arith.cmpi slt, %19, %82 : vector<8x256xi32>
    %cst_21 = arith.constant 0.000000e+00 : f32
    %84 = vector.broadcast %cst_21 : f32 to vector<8x256xf32>
    %85 = arith.select %83, %81, %84 : vector<8x256xi1>, vector<8x256xf32>
    %cst_22 = arith.constant 0.0483337194 : f32
    %86 = vector.broadcast %cst_22 : f32 to vector<8x256xf32>
    %87 = arith.mulf %86, %85 : vector<8x256xf32>
    %88 = arith.addf %80, %87 : vector<8x256xf32>
    %89 = vector.extract_strided_slice %2 {offsets = [0, 9], sizes = [8, 256], strides = [1, 1]} : vector<8x268xf32> to vector<8x256xf32>
    %c13_i32 = arith.constant 13 : i32
    %90 = vector.broadcast %c13_i32 : i32 to vector<8x256xi32>
    %91 = arith.cmpi slt, %19, %90 : vector<8x256xi32>
    %cst_23 = arith.constant 0.000000e+00 : f32
    %92 = vector.broadcast %cst_23 : f32 to vector<8x256xf32>
    %93 = arith.select %91, %89, %92 : vector<8x256xi1>, vector<8x256xf32>
    %cst_24 = arith.constant -0.0121011613 : f32
    %94 = vector.broadcast %cst_24 : f32 to vector<8x256xf32>
    %95 = arith.mulf %94, %93 : vector<8x256xf32>
    %96 = arith.addf %88, %95 : vector<8x256xf32>
    %97 = vector.extract_strided_slice %2 {offsets = [0, 10], sizes = [8, 256], strides = [1, 1]} : vector<8x268xf32> to vector<8x256xf32>
    %c12_i32 = arith.constant 12 : i32
    %98 = vector.broadcast %c12_i32 : i32 to vector<8x256xi32>
    %99 = arith.cmpi slt, %19, %98 : vector<8x256xi32>
    %cst_25 = arith.constant 0.000000e+00 : f32
    %100 = vector.broadcast %cst_25 : f32 to vector<8x256xf32>
    %101 = arith.select %99, %97, %100 : vector<8x256xi1>, vector<8x256xf32>
    %cst_26 = arith.constant 0.00172930176 : f32
    %102 = vector.broadcast %cst_26 : f32 to vector<8x256xf32>
    %103 = arith.mulf %102, %101 : vector<8x256xf32>
    %104 = arith.addf %96, %103 : vector<8x256xf32>
    %105 = vector.extract_strided_slice %2 {offsets = [0, 11], sizes = [8, 256], strides = [1, 1]} : vector<8x268xf32> to vector<8x256xf32>
    %c11_i32 = arith.constant 11 : i32
    %106 = vector.broadcast %c11_i32 : i32 to vector<8x256xi32>
    %107 = arith.cmpi slt, %19, %106 : vector<8x256xi32>
    %cst_27 = arith.constant 0.000000e+00 : f32
    %108 = vector.broadcast %cst_27 : f32 to vector<8x256xf32>
    %109 = arith.select %107, %105, %108 : vector<8x256xi1>, vector<8x256xf32>
    %cst_28 = arith.constant -3.59285477E-5 : f32
    %110 = vector.broadcast %cst_28 : f32 to vector<8x256xf32>
    %111 = arith.mulf %110, %109 : vector<8x256xf32>
    %112 = arith.addf %104, %111 : vector<8x256xf32>
    %c0_29 = arith.constant 0 : index
    %c0_30 = arith.constant 0 : index
    %113 = vector.load %arg2[%c0_29, %c0_30] : memref<8x256xf32, #tpu.memory_space<vmem>>, vector<8x256xf32>
    tpu.vector_store %arg2[%c0_29, %c0_30], %112 {strides = array<i32>} : memref<8x256xf32, #tpu.memory_space<vmem>>, vector<8x256xf32>,
    return
  }
  func.func @transform_0(%arg0: i32) -> (i32, i32) {
    %c0_i32 = arith.constant 0 : i32
    %c0_i32_0 = arith.constant 0 : i32
    return %arg0, %c0_i32 : i32, i32
  }
  func.func @transform_1(%arg0: i32) -> (i32, i32) {
    %c0_i32 = arith.constant 0 : i32
    %c0_i32_0 = arith.constant 0 : i32
    return %arg0, %c0_i32 : i32, i32
  }
}

</mosaic_0001>

<llo_original>
// kernel: lowpass_filter_1d.1
$region0: #{lowpass_filter_1d.1}
  #allocation0 [shape = 'u32[]', space=smem, size = 0x4, offset = 0x4, fixed_abs, tag = 'smem constant byte address 0x4 - core index']
  #allocation1 [shape = 'u32[72,128]{1,0:T(1,128)}', space=vmem, size = 0x9000, scoped, tag = 'internal scratch']
  %s0 = inlined_call_operand.vmem [shape: f32[8,256], index: 0, kind: input, shape index: {}]
  %s1 = inlined_call_operand.vmem [shape: f32[8,256], index: 1, kind: output, shape index: {}]
  %s2 = sld [smem:[#allocation0]]
  $region14: #{lowpass_filter_1d.1} parent=0
    _
  %s4 = ssub.s32 1, %s2
  %s5 = scalar_select 0, %s4, %s2
  // Predicated region
  $region2: #{lowpass_filter_1d.1} parent=0 // pred_check
    _
  $region3: #{lowpass_filter_1d.1} parent=0 // pred_check_branch
    %7 = sbr.rel (0) target = $region5
  $region4: #{lowpass_filter_1d.1} parent=0 // pred_region
    _
  $region5: #{lowpass_filter_1d.1} parent=0 // pred_fallthru
    _
  %v8 = vld [vmem:[%s0] sm:$0xff]
  %v9 = vld [vmem:[%s0 + $0x8] sm:$0xff]
  %12 = vrot.lane.b32.xlu0 %v8, 6
  %v13 = vpop.permute.xlu0 %12
  %14 = vrot.lane.b32.xlu0 %v9, 6
  %v15 = vpop.permute.xlu0 %14
  %vm16 = vcmask 48128
  %v17 = vsel %vm16, %v13, %v15
  %v21 = vsel %vm16, 0.0, %v13
  %v22 = vsel %vm16, %v15, 0.0
  %v23 = vlaneseq
  %v24 = vand.u32 %v23, 127
  %v25 = vadd.s32 %v24, 128
  %vm26 = vcmp.lt.s32.totalorder %v24, 0
  %v27 = vsub.s32 0, %v24
  %v28 = vsel %vm26, %v27, %v24
  %v29 = vshrl.u32 %v28, 4
  %v30 = vand.u32 %v28, 15
  %v31 = vsub.s32 0, %v30
  %v32 = vsel %vm26, %v31, %v30
  %vm33 = vcmp.lt.s32.totalorder %v25, 0
  %v34 = vsub.s32 0, %v25
  %v35 = vsel %vm33, %v34, %v25
  %v36 = vshrl.u32 %v35, 4
  %v37 = vand.u32 %v35, 15
  %v38 = vsub.s32 0, %v37
  %v39 = vsel %vm33, %v38, %v37
  %vm40 = vcmp.ne.s32.totalorder %v32, 0
  %vm41 = vcmp.ne.s32.totalorder %v39, 0
  %vm42 = vcmp.lt.s32.totalorder %v32, 0
  %vm43 = vcmp.lt.s32.totalorder %v39, 0
  %vm44 = vmand %vm42, %vm40
  %vm45 = vmand %vm43, %vm41
  %v46 = vadd.s32 %v32, 16
  %v47 = vadd.s32 %v39, 16
  %v48 = vsel %vm44, %v46, %v32
  %v49 = vsel %vm45, %v47, %v39
  %vm50 = vcmp.ge.s32.totalorder %v48, 6
  %vm51 = vcmp.ge.s32.totalorder %v49, 6
  %v52 = vsel %vm50, %v21, 0.0
  %v53 = vsel %vm51, %v17, 0.0
  %v54 = vmul.f32 %v52, -3.5928548e-05
  %v55 = vmul.f32 %v53, -3.5928548e-05
  %v56 = vadd.f32 %v54, 0.0
  %v57 = vadd.f32 %v55, 0.0
  %vm58 = vcmp.ge.s32.totalorder %v48, 5
  %vm59 = vcmp.ge.s32.totalorder %v49, 5
  %62 = vrot.lane.b32.xlu0 %v21, 127
  %v63 = vpop.permute.xlu0 %62
  %64 = vrot.lane.b32.xlu0 %v17, 127
  %v65 = vpop.permute.xlu0 %64
  %66 = vrot.lane.b32.xlu0 %v22, 127
  %v67 = vpop.permute.xlu0 %66
  %vm68 = vcmask 1039360
  %v69 = vsel %vm68, %v63, %v65
  %v70 = vsel %vm68, %v65, %v67
  %v73 = vsel %vm58, %v69, 0.0
  %v74 = vsel %vm59, %v70, 0.0
  %v75 = vmul.f32 %v73, 0.0017293025
  %v76 = vmul.f32 %v74, 0.0017293025
  %v77 = vadd.f32 %v56, %v75
  %v78 = vadd.f32 %v57, %v76
  %vm79 = vcmp.ge.s32.totalorder %v48, 4
  %vm80 = vcmp.ge.s32.totalorder %v49, 4
  %81 = vrot.lane.b32.xlu0 %v21, 126
  %v82 = vpop.permute.xlu0 %81
  %83 = vrot.lane.b32.xlu0 %v17, 126
  %v84 = vpop.permute.xlu0 %83
  %85 = vrot.lane.b32.xlu0 %v22, 126
  %v86 = vpop.permute.xlu0 %85
  %vm87 = vcmask 1031168
  %v88 = vsel %vm87, %v82, %v84
  %v89 = vsel %vm87, %v84, %v86
  %v92 = vsel %vm79, %v88, 0.0
  %v93 = vsel %vm80, %v89, 0.0
  %v94 = vmul.f32 %v92, -0.012101161
  %v95 = vmul.f32 %v93, -0.012101161
  %v96 = vadd.f32 %v77, %v94
  %v97 = vadd.f32 %v78, %v95
  %vm98 = vcmp.ge.s32.totalorder %v48, 3
  %vm99 = vcmp.ge.s32.totalorder %v49, 3
  %100 = vrot.lane.b32.xlu0 %v21, 125
  %v101 = vpop.permute.xlu0 %100
  %102 = vrot.lane.b32.xlu0 %v17, 125
  %v103 = vpop.permute.xlu0 %102
  %104 = vrot.lane.b32.xlu0 %v22, 125
  %v105 = vpop.permute.xlu0 %104
  %vm106 = vcmask 1022976
  %v107 = vsel %vm106, %v101, %v103
  %v108 = vsel %vm106, %v103, %v105
  %v111 = vsel %vm98, %v107, 0.0
  %v112 = vsel %vm99, %v108, 0.0
  %v113 = vmul.f32 %v111, 0.04833372
  %v114 = vmul.f32 %v112, 0.04833372
  %v115 = vadd.f32 %v96, %v113
  %v116 = vadd.f32 %v97, %v114
  %vm117 = vcmp.ge.s32.totalorder %v48, 2
  %vm118 = vcmp.ge.s32.totalorder %v49, 2
  %119 = vrot.lane.b32.xlu0 %v21, 124
  %v120 = vpop.permute.xlu0 %119
  %121 = vrot.lane.b32.xlu0 %v17, 124
  %v122 = vpop.permute.xlu0 %121
  %123 = vrot.lane.b32.xlu0 %v22, 124
  %v124 = vpop.permute.xlu0 %123
  %vm125 = vcmask 1014784
  %v126 = vsel %vm125, %v120, %v122
  %v127 = vsel %vm125, %v122, %v124
  %v130 = vsel %vm117, %v126, 0.0
  %v131 = vsel %vm118, %v127, 0.0
  %v132 = vmul.f32 %v130, -0.15152381
  %v133 = vmul.f32 %v131, -0.15152381
  %v134 = vadd.f32 %v115, %v132
  %v135 = vadd.f32 %v116, %v133
  %vm136 = vcmp.ge.s32.totalorder %v48, 1
  %vm137 = vcmp.ge.s32.totalorder %v49, 1
  %138 = vrot.lane.b32.xlu0 %v21, 123
  %v139 = vpop.permute.xlu0 %138
  %140 = vrot.lane.b32.xlu0 %v17, 123
  %v141 = vpop.permute.xlu0 %140
  %142 = vrot.lane.b32.xlu0 %v22, 123
  %v143 = vpop.permute.xlu0 %142
  %vm144 = vcmask 1006592
  %v145 = vsel %vm144, %v139, %v141
  %v146 = vsel %vm144, %v141, %v143
  %v149 = vsel %vm136, %v145, 0.0
  %v150 = vsel %vm137, %v146, 0.0
  %v151 = vmul.f32 %v149, 0.6135979
  %v152 = vmul.f32 %v150, 0.6135979
  %v153 = vadd.f32 %v134, %v151
  %v154 = vadd.f32 %v135, %v152
  %v155 = vmul.f32 %v21, 0.6135979
  %v156 = vmul.f32 %v17, 0.6135979
  %v157 = vmul.f32 %v22, 0.6135979
  %161 = vrot.lane.b32.xlu0 %v155, 122
  %v162 = vpop.permute.xlu0 %161
  %163 = vrot.lane.b32.xlu0 %v156, 122
  %v164 = vpop.permute.xlu0 %163
  %165 = vrot.lane.b32.xlu0 %v157, 122
  %v166 = vpop.permute.xlu0 %165
  %vm167 = vcmask 998400
  %v168 = vsel %vm167, %v162, %v164
  %v169 = vsel %vm167, %v164, %v166
  %v172 = vadd.f32 %v153, %v168
  %v173 = vadd.f32 %v154, %v169
  %vm174 = vcmp.lt.s32.totalorder %v48, 15
  %vm175 = vcmp.lt.s32.totalorder %v49, 15
  %176 = vrot.lane.b32.xlu0 %v21, 121
  %v177 = vpop.permute.xlu0 %176
  %178 = vrot.lane.b32.xlu0 %v17, 121
  %v179 = vpop.permute.xlu0 %178
  %180 = vrot.lane.b32.xlu0 %v22, 121
  %v181 = vpop.permute.xlu0 %180
  %vm182 = vcmask 990208
  %v183 = vsel %vm182, %v177, %v179
  %v184 = vsel %vm182, %v179, %v181
  %v187 = vsel %vm174, %v183, 0.0
  %v188 = vsel %vm175, %v184, 0.0
  %v189 = vmul.f32 %v187, -0.15152381
  %v190 = vmul.f32 %v188, -0.15152381
  %v191 = vadd.f32 %v172, %v189
  %v192 = vadd.f32 %v173, %v190
  %vm193 = vcmp.lt.s32.totalorder %v48, 14
  %vm194 = vcmp.lt.s32.totalorder %v49, 14
  %195 = vrot.lane.b32.xlu0 %v21, 120
  %v196 = vpop.permute.xlu0 %195
  %197 = vrot.lane.b32.xlu0 %v17, 120
  %v198 = vpop.permute.xlu0 %197
  %199 = vrot.lane.b32.xlu0 %v22, 120
  %v200 = vpop.permute.xlu0 %199
  %vm201 = vcmask 982016
  %v202 = vsel %vm201, %v196, %v198
  %v203 = vsel %vm201, %v198, %v200
  %v206 = vsel %vm193, %v202, 0.0
  %v207 = vsel %vm194, %v203, 0.0
  %v208 = vmul.f32 %v206, 0.04833372
  %v209 = vmul.f32 %v207, 0.04833372
  %v210 = vadd.f32 %v191, %v208
  %v211 = vadd.f32 %v192, %v209
  %vm212 = vcmp.lt.s32.totalorder %v48, 13
  %vm213 = vcmp.lt.s32.totalorder %v49, 13
  %214 = vrot.lane.b32.xlu0 %v21, 119
  %v215 = vpop.permute.xlu0 %214
  %216 = vrot.lane.b32.xlu0 %v17, 119
  %v217 = vpop.permute.xlu0 %216
  %218 = vrot.lane.b32.xlu0 %v22, 119
  %v219 = vpop.permute.xlu0 %218
  %vm220 = vcmask 973824
  %v221 = vsel %vm220, %v215, %v217
  %v222 = vsel %vm220, %v217, %v219
  %v225 = vsel %vm212, %v221, 0.0
  %v226 = vsel %vm213, %v222, 0.0
  %v227 = vmul.f32 %v225, -0.012101161
  %v228 = vmul.f32 %v226, -0.012101161
  %v229 = vadd.f32 %v210, %v227
  %v230 = vadd.f32 %v211, %v228
  %vm231 = vcmp.lt.s32.totalorder %v48, 12
  %vm232 = vcmp.lt.s32.totalorder %v49, 12
  %233 = vrot.lane.b32.xlu0 %v21, 118
  %v234 = vpop.permute.xlu0 %233
  %235 = vrot.lane.b32.xlu0 %v17, 118
  %v236 = vpop.permute.xlu0 %235
  %237 = vrot.lane.b32.xlu0 %v22, 118
  %v238 = vpop.permute.xlu0 %237
  %vm239 = vcmask 965632
  %v240 = vsel %vm239, %v234, %v236
  %v241 = vsel %vm239, %v236, %v238
  %v244 = vsel %vm231, %v240, 0.0
  %v245 = vsel %vm232, %v241, 0.0
  %v246 = vmul.f32 %v244, 0.0017293018
  %v247 = vmul.f32 %v245, 0.0017293018
  %v248 = vadd.f32 %v229, %v246
  %v249 = vadd.f32 %v230, %v247
  %vm250 = vcmp.lt.s32.totalorder %v48, 11
  %vm251 = vcmp.lt.s32.totalorder %v49, 11
  %252 = vrot.lane.b32.xlu0 %v21, 117
  %v253 = vpop.permute.xlu0 %252
  %254 = vrot.lane.b32.xlu0 %v17, 117
  %v255 = vpop.permute.xlu0 %254
  %256 = vrot.lane.b32.xlu0 %v22, 117
  %v257 = vpop.permute.xlu0 %256
  %vm258 = vcmask 957440
  %v259 = vsel %vm258, %v253, %v255
  %v260 = vsel %vm258, %v255, %v257
  %v263 = vsel %vm250, %v259, 0.0
  %v264 = vsel %vm251, %v260, 0.0
  %v265 = vmul.f32 %v263, -3.5928548e-05
  %v266 = vmul.f32 %v264, -3.5928548e-05
  %v267 = vadd.f32 %v248, %v265
  %v268 = vadd.f32 %v249, %v266
  %269 = vst [vmem:[%s1] sm:$0xff] %v267
  %270 = vst [vmem:[%s1 + $0x8] sm:$0xff] %v268
  // Predicated region
  $region6: #{lowpass_filter_1d.1} parent=0 // pred_check
    _
  $region7: #{lowpass_filter_1d.1} parent=0 // pred_check_branch
    %272 = sbr.rel (0) target = $region9
  $region8: #{lowpass_filter_1d.1} parent=0 // pred_region
    _
  $region9: #{lowpass_filter_1d.1} parent=0 // pred_fallthru
    _
  // Predicated region
  $region10: #{lowpass_filter_1d.1} parent=0 // pred_check
    _
  $region11: #{lowpass_filter_1d.1} parent=0 // pred_check_branch
    %274 = sbr.rel (0) target = $region13
  $region12: #{lowpass_filter_1d.1} parent=0 // pred_region
    _
  $region13: #{lowpass_filter_1d.1} parent=0 // pred_fallthru
    _

</llo_original>
